<compile_context>
chip_gen: v6e
topology: v6e:2x2x1
jax: 0.10.0
libtpu: 0.0.40
codegen_flags: <defaults>
</compile_context>

<pallas_src>
import functools

import jax
import jax.numpy as jnp
from jax.experimental import pallas as pl
from jax.experimental.pallas import tpu as pltpu


def _round_up(x, m):
    return ((x + m - 1) // m) * m


# --------------------------------------------------------------------------
# Pallas kernel 1: row-tiled linear projection  y = x @ w   (w stored [in, out])
# --------------------------------------------------------------------------
def _linear_kernel(x_ref, w_ref, o_ref):
    o_ref[...] = jnp.dot(x_ref[...], w_ref[...],
                         preferred_element_type=jnp.float32)


def pallas_linear(x, w, row_tile=None):
    rows, in_dim = x.shape
    out_dim = w.shape[1]
    if row_tile is None or row_tile >= rows or rows % row_tile != 0:
        row_tile = rows
    return pl.pallas_call(
        _linear_kernel,
        out_shape=jax.ShapeDtypeStruct((rows, out_dim), jnp.float32),
        grid=(rows // row_tile,),
        in_specs=[pl.BlockSpec((row_tile, in_dim), lambda i: (i, 0)),
                  pl.BlockSpec((in_dim, out_dim), lambda i: (0, 0))],
        out_specs=pl.BlockSpec((row_tile, out_dim), lambda i: (i, 0)),
        compiler_params=pltpu.CompilerParams(
            dimension_semantics=("parallel",)),
    )(x, w)


# --------------------------------------------------------------------------
# Pallas kernel 2: HGN attention, online cross-relation edge-softmax,
# aggregation, residual + LeakyReLU + LayerNorm (fused, flash-style tiled)
# --------------------------------------------------------------------------
def _hgn_attn_kernel(el_ref, er_ref, adj_ref, featT_ref, h0t_ref,
                     gamma_ref, beta_ref, out_ref,
                     m_i, l_i, acc, *, num_rel, neg_slope, ln_eps):
    j = pl.program_id(1)
    nj = pl.num_programs(1)

    @pl.when(j == 0)
    def _init():
        m_i[...] = jnp.full_like(m_i, -1e30)        # finite: avoids inf-inf NaN
        l_i[...] = jnp.zeros_like(l_i)
        acc[...] = jnp.zeros_like(acc)

    el = el_ref[...]                                 # [H, tn]   src logits
    er = er_ref[...]                                 # [R, H, tm] dst+edge logits
    adj = adj_ref[...]                               # [R, tm, tn] int8 edge mask

    H, TM = m_i.shape
    TN = el.shape[1]

    def masked_scores(r):
        # [H, tm, tn]; LeakyReLU(el + er); non-edges -> -inf so exp() == 0
        s = er[r][:, :, None] + el[:, None, :]
        s = jnp.where(s >= 0.0, s, neg_slope * s)
        neg = jnp.where(adj[r] > 0, 0.0, -jnp.inf)   # additive mask [tm, tn]
        return s + neg[None, :, :]

    # ---- online (flash-style) softmax across src tiles and relations --------
    tile_max = jnp.full((H, TM), -jnp.inf, jnp.float32)
    for r in range(num_rel):                         # R is small; cheap recompute
        tile_max = jnp.maximum(tile_max, jnp.max(masked_scores(r), axis=-1))

    m_prev = m_i[...]
    m_new = jnp.maximum(m_prev, tile_max)            # stays finite (>= -1e30)
    alpha = jnp.exp(m_prev - m_new)                  # [H, tm]

    # Relations share feat_src, so their exp-scores are summed before the
    # matmul: ONE batched MXU contraction per tile instead of R of them.
    p_sum = jnp.zeros((H, TM, TN), jnp.float32)
    for r in range(num_rel):
        p_sum = p_sum + jnp.exp(masked_scores(r) - m_new[:, :, None])

    l_i[...] = alpha * l_i[...] + jnp.sum(p_sum, axis=-1)

    # transposed aggregation: [H,d_k,tn] x [H,tm,tn] --contract tn--> [H,d_k,tm]
    # (the large dst-tile dim sits on the MXU output / lane axis)
    contrib = jax.lax.dot_general(
        featT_ref[...], p_sum,
        dimension_numbers=(((2,), (2,)), ((0,), (0,))),
        preferred_element_type=jnp.float32)
    acc[...] = alpha[:, None, :] * acc[...] + contrib
    m_i[...] = m_new

    # ---- finalize: deferred normalization + residual + LeakyReLU + LayerNorm
    @pl.when(j == nj - 1)
    def _finalize():
        l = l_i[...]
        l_safe = jnp.where(l > 0.0, l, 1.0)          # zero-in-degree / padded rows
        inv_l = pl.reciprocal(l_safe, approx=True)   # EUP slot, deferred softmax norm
        t = acc[...] * inv_l[:, None, :]             # [H, d_k, tm]
        t = t.reshape(t.shape[0] * t.shape[1], t.shape[2])   # [OUT, tm] lane-dense
        x = t + h0t_ref[...]                         # residual (h0 feature-major)
        x = jnp.where(x >= 0.0, x, neg_slope * x)    # LeakyReLU
        mean = jnp.mean(x, axis=0, keepdims=True)    # LayerNorm over feature axis
        var = jnp.mean((x - mean) ** 2, axis=0, keepdims=True)
        xn = (x - mean) * jax.lax.rsqrt(var + ln_eps)
        out_ref[...] = xn * gamma_ref[...] + beta_ref[...]


# --------------------------------------------------------------------------
# Wrapper: full SimpleHGNLayer forward
# --------------------------------------------------------------------------
def simple_hgn_layer(h_all, dst_index, adj, params, *, num_heads,
                     neg_slope=0.2, ln_eps=1e-5, tm=128, tn=512):
    """tm/tn are dst/src tile sizes (multiples of 128).  Pick larger tn on
    v5e/v6e (128 MiB VMEM) and smaller on v7x (64 MiB)."""
    out_dim = params["w_fc"].shape[1]
    d_k = out_dim // num_heads
    N = h_all.shape[0]
    R, M, _ = adj.shape

    M_pad = _round_up(M, tm)
    N_pad = _round_up(N, tn)

    h_pad = jnp.zeros((N_pad, h_all.shape[1]), jnp.float32).at[:N].set(h_all)
    adj_i8 = jnp.zeros((R, M_pad, N_pad), jnp.int8).at[:, :M, :N].set(
        (adj > 0).astype(jnp.int8))
    dst_pad = jnp.zeros((M_pad,), dst_index.dtype).at[:M].set(dst_index)

    # fc(feat_drop(h)); feat_drop is eval-mode identity, fc has no bias.
    # TODO(synk): training-mode dropout (feat_drop) is not implemented.
    h_fc = pallas_linear(h_pad, params["w_fc"], row_tile=128)       # [N_pad, OUT]
    # 3xOUT edge projection is tiny glue -> leave to XLA (per perf review).
    edge_fc = params["edge_emb"] @ params["w_fc_edge"]              # [R, OUT]

    h0 = h_fc[dst_pad]                                              # [M_pad, OUT]

    # attention logits (small [*, H] tensors -> cheap XLA glue)
    fs = h_fc.reshape(N_pad, num_heads, d_k)
    el = jnp.sum(fs * params["attn_l"], axis=-1)                    # [N_pad, H]
    er = jnp.sum(h0.reshape(M_pad, num_heads, d_k) * params["attn_r"], axis=-1)
    ee = jnp.sum(edge_fc.reshape(R, num_heads, d_k) * params["attn_e"], axis=-1)
    er_full = er[None, :, :] + ee[:, None, :]                       # [R, M_pad, H]

    # head-major / feature-major layouts so the kernel never lane-slices heads
    el_hn = el.T                                                    # [H, N_pad]
    er_rhm = jnp.transpose(er_full, (0, 2, 1))                      # [R, H, M_pad]
    feat_t = jnp.transpose(fs, (1, 2, 0))                           # [H, d_k, N_pad]
    h0_t = h0.T                                                     # [OUT, M_pad]

    grid = (M_pad // tm, N_pad // tn)
    kernel = functools.partial(_hgn_attn_kernel, num_rel=R,
                               neg_slope=neg_slope, ln_eps=ln_eps)

    out_t = pl.pallas_call(
        kernel,
        out_shape=jax.ShapeDtypeStruct((out_dim, M_pad), jnp.float32),
        grid_spec=pltpu.PrefetchScalarGridSpec(
            num_scalar_prefetch=0,
            grid=grid,
            in_specs=[
                pl.BlockSpec((num_heads, tn), lambda i, j: (0, j)),           # el
                pl.BlockSpec((R, num_heads, tm), lambda i, j: (0, 0, i)),     # er
                pl.BlockSpec((R, tm, tn), lambda i, j: (0, i, j)),            # adj
                pl.BlockSpec((num_heads, d_k, tn), lambda i, j: (0, 0, j)),   # feat^T
                pl.BlockSpec((out_dim, tm), lambda i, j: (0, i)),             # h0^T
                pl.BlockSpec((out_dim, 1), lambda i, j: (0, 0)),              # gamma
                pl.BlockSpec((out_dim, 1), lambda i, j: (0, 0)),              # beta
            ],
            out_specs=pl.BlockSpec((out_dim, tm), lambda i, j: (0, i)),
            scratch_shapes=[pltpu.VMEM((num_heads, tm), jnp.float32),        # m_i
                            pltpu.VMEM((num_heads, tm), jnp.float32),        # l_i
                            pltpu.VMEM((num_heads, d_k, tm), jnp.float32)]), # acc
        compiler_params=pltpu.CompilerParams(
            dimension_semantics=("parallel", "arbitrary"),
            vmem_limit_bytes=48 * 1024 * 1024),
    )(el_hn, er_rhm, adj_i8, feat_t, h0_t,
      params["ln_gamma"].reshape(out_dim, 1),
      params["ln_beta"].reshape(out_dim, 1))

    return out_t.T[:M]                                              # [M, OUT]


# --------------------------------------------------------------------------
# Pure-JAX reference (mirrors the PyTorch/DGL forward semantics)
# --------------------------------------------------------------------------
def reference(h_all, dst_index, adj, params, *, num_heads,
              neg_slope=0.2, ln_eps=1e-5):
    out_dim = params["w_fc"].shape[1]
    d_k = out_dim // num_heads
    N = h_all.shape[0]
    R, M, _ = adj.shape
    h_fc = h_all @ params["w_fc"]
    h0 = h_fc[dst_index]
    ee_feat = params["edge_emb"] @ params["w_fc_edge"]
    fs = h_fc.reshape(N, num_heads, d_k)
    fd = h0.reshape(M, num_heads, d_k)
    fe = ee_feat.reshape(R, num_heads, d_k)
    el = (fs * params["attn_l"]).sum(-1)            # [N, H]
    er = (fd * params["attn_r"]).sum(-1)            # [M, H]
    ee = (fe * params["attn_e"]).sum(-1)            # [R, H]
    s = el[None, None, :, :] + er[None, :, None, :] + ee[:, None, None, :]
    s = jnp.where(s >= 0, s, neg_slope * s)
    s = jnp.where(adj[..., None] > 0, s, -1e30)
    smax = jnp.max(s, axis=(0, 2), keepdims=True)
    p = jnp.exp(s - smax) * adj[..., None]
    denom = jnp.sum(p, axis=(0, 2), keepdims=True)
    attn = p / denom                                # [R, M, N, H]
    t = jnp.einsum('rmnh,nhd->mhd', attn, fs).reshape(M, out_dim)
    x = t + h0
    x = jnp.where(x >= 0, x, neg_slope * x)
    mean = x.mean(-1, keepdims=True)
    var = ((x - mean) ** 2).mean(-1, keepdims=True)
    xn = (x - mean) / jnp.sqrt(var + ln_eps)
    return xn * params["ln_gamma"] + params["ln_beta"]


# --------------------------------------------------------------------------
def _xavier_uniform(key, shape):
    fan_in, fan_out = shape[-2] if len(shape) > 1 else shape[-1], shape[-1]
    bound = (6.0 / (fan_in + fan_out)) ** 0.5
    return jax.random.uniform(key, shape, jnp.float32, -bound, bound)


if __name__ == "__main__":
    # ---- module configuration (small, but big enough for a 2x2 tile grid) ----
    relations = [("A", "ab", "B"), ("B", "ba", "A"), ("A", "aa", "A")]
    in_dim, out_dim, num_heads = 16, 32, 4
    R = len(relations)
    N_A, N_B = 96, 64                       # src nodes per type
    M_A, M_B = 80, 50                       # dst nodes per type (prefix of src)
    N_total, M_total = N_A + N_B, M_A + M_B

    key = jax.random.PRNGKey(0)
    keys = jax.random.split(key, 10)

    # ---- parameters (deterministic synthetic init) ----
    params = {
        "w_fc":      _xavier_uniform(keys[0], (in_dim, out_dim)),
        "w_fc_edge": _xavier_uniform(keys[1], (out_dim, out_dim)),
        "edge_emb":  _xavier_uniform(keys[2], (R, out_dim)),
        "attn_l":    _xavier_uniform(keys[3], (1, num_heads, out_dim // num_heads)),
        "attn_r":    _xavier_uniform(keys[4], (1, num_heads, out_dim // num_heads)),
        "attn_e":    _xavier_uniform(keys[5], (1, num_heads, out_dim // num_heads)),
        "ln_gamma":  jnp.ones((out_dim,), jnp.float32),
        "ln_beta":   jnp.zeros((out_dim,), jnp.float32),
    }

    # ---- node features (stacked: type A then type B) ----
    h_A = jax.random.normal(keys[6], (N_A, in_dim), jnp.float32)
    h_B = jax.random.normal(keys[7], (N_B, in_dim), jnp.float32)
    h_all = jnp.concatenate([h_A, h_B], axis=0)                    # [N_total, in_dim]
    # dst nodes = prefix of each type's src nodes, mapped to global src idx
    dst_index = jnp.concatenate([jnp.arange(M_A), N_A + jnp.arange(M_B)])

    # ---- dense heterogeneous adjacency masks [R, M_total, N_total] ----
    src_type = jnp.concatenate([jnp.zeros(N_A, jnp.int32), jnp.ones(N_B, jnp.int32)])
    dst_type = jnp.concatenate([jnp.zeros(M_A, jnp.int32), jnp.ones(M_B, jnp.int32)])
    rel_src = jnp.array([0, 1, 0], jnp.int32)   # srctype per relation (A,B,A)
    rel_dst = jnp.array([1, 0, 0], jnp.int32)   # dsttype per relation (B,A,A)
    valid = ((dst_type[None, :, None] == rel_dst[:, None, None]) &
             (src_type[None, None, :] == rel_src[:, None, None]))
    rand_edges = jax.random.bernoulli(keys[8], 0.15, (R, M_total, N_total))
    adj = (rand_edges & valid).astype(jnp.float32)
    # guarantee every dst node has at least one incoming edge (vectorized)
    adj = adj.at[0, M_A + jnp.arange(M_B), jnp.arange(M_B) % N_A].set(1.0)
    adj = adj.at[1, jnp.arange(M_A), N_A + (jnp.arange(M_A) % N_B)].set(1.0)
    adj = adj.at[2, jnp.arange(M_A), jnp.arange(M_A)].set(1.0)

    # ---- run Pallas kernels (tm=tn=128 -> 2x2 grid at this toy size) ----
    out = simple_hgn_layer(h_all, dst_index, adj, params,
                           num_heads=num_heads, tm=128, tn=128)
    out = jax.block_until_ready(out)

    # split back into per-ntype outputs (like the dict the module returns)
    new_h = {"A": out[:M_A], "B": out[M_A:]}

    # ---- verify against pure-JAX reference ----
    ref = reference(h_all, dst_index, adj, params, num_heads=num_heads)
    assert out.shape == (M_total, out_dim)
    assert bool(jnp.all(jnp.isfinite(out)))
    max_err = float(jnp.max(jnp.abs(out - ref)))
    assert jnp.allclose(out, ref, rtol=1e-2, atol=1e-2), \
        f"max abs err {max_err}"

    print("KERNEL_OK")
</pallas_src>

<mosaic_0001>
module attributes {stable_mosaic.version = 11 : i64} {
  func.func @_linear_kernel(%arg0: i32, %arg1: memref<128x16xf32, #tpu.memory_space<vmem>>, %arg2: memref<16x32xf32, #tpu.memory_space<vmem>>, %arg3: memref<128x32xf32, #tpu.memory_space<vmem>>) attributes {dimension_semantics = [#tpu.dimension_semantics<parallel>], iteration_bounds = array<i64: 2>, scalar_prefetch = 0 : i64, scratch_operands = 0 : i64, tpu.core_type = #tpu.core_type<tc>, window_params = [{transform_indices = @transform_0, window_bounds = array<i64: 128, 16>}, {pipeline_mode = #tpu.pipeline_mode<synchronous>, transform_indices = @transform_1, window_bounds = array<i64: 16, 32>}, {transform_indices = @transform_2, window_bounds = array<i64: 128, 32>}]} {
    %c0 = arith.constant 0 : index
    %c0_0 = arith.constant 0 : index
    %0 = vector.load %arg1[%c0, %c0_0] : memref<128x16xf32, #tpu.memory_space<vmem>>, vector<128x16xf32>
    %c0_1 = arith.constant 0 : index
    %c0_2 = arith.constant 0 : index
    %1 = vector.load %arg2[%c0_1, %c0_2] : memref<16x32xf32, #tpu.memory_space<vmem>>, vector<16x32xf32>
    %cst = arith.constant dense<0.000000e+00> : vector<128x32xf32>
    %2 = tpu.matmul %0, %1, %cst {dimension_numbers = #tpu.dot_dimension_numbers<[1], [0], [0], [1], [0, 0, 1, 1], [], []>} : vector<128x16xf32>, vector<16x32xf32>, vector<128x32xf32> -> vector<128x32xf32>
    %c0_3 = arith.constant 0 : index
    %c0_4 = arith.constant 0 : index
    %3 = vector.load %arg3[%c0_3, %c0_4] : memref<128x32xf32, #tpu.memory_space<vmem>>, vector<128x32xf32>
    tpu.vector_store %arg3[%c0_3, %c0_4], %2 {strides = array<i32>} : memref<128x32xf32, #tpu.memory_space<vmem>>, vector<128x32xf32>,
    return
  }
  func.func @transform_0(%arg0: i32) -> (i32, i32) {
    %c0_i32 = arith.constant 0 : i32
    %c0_i32_0 = arith.constant 0 : i32
    return %arg0, %c0_i32 : i32, i32
  }
  func.func @transform_1(%arg0: i32) -> (i32, i32) {
    %c0_i32 = arith.constant 0 : i32
    %c0_i32_0 = arith.constant 0 : i32
    %c0_i32_1 = arith.constant 0 : i32
    return %c0_i32, %c0_i32_0 : i32, i32
  }
  func.func @transform_2(%arg0: i32) -> (i32, i32) {
    %c0_i32 = arith.constant 0 : i32
    %c0_i32_0 = arith.constant 0 : i32
    return %arg0, %c0_i32 : i32, i32
  }
}

</mosaic_0001>

<llo_original>
// kernel: tpu_custom_call.1
$region0: #{tpu_custom_call.1}
  #allocation0 [shape = 'u32[]', space=smem, size = 0x4, offset = 0x4, fixed_abs, tag = 'smem constant byte address 0x4 - core index']
  #allocation1 [shape = 'u32[144,128]{1,0:T(1,128)}', space=vmem, size = 0x12000, scoped, tag = 'internal scratch']
  %s0 = inlined_call_operand.vmem [shape: f32[256,16], index: 0, kind: input, shape index: {}]
  %s1 = inlined_call_operand.vmem [shape: f32[16,32], index: 1, kind: input, shape index: {}]
  %s2 = inlined_call_operand.vmem [shape: f32[256,32], index: 2, kind: output, shape index: {}]
  %s3 = sld [smem:[#allocation0]]
  $region41: #{tpu_custom_call.1} parent=0
    _
  %s5 = ssub.s32 1, %s3
  %s6 = scalar_select 0, %s5, %s3
  loop: start=0, step=1, limit=4
  $region2: #{tpu_custom_call.1} parent=0 // loop_pre_header
    _
  $region3: #{tpu_custom_call.1} parent=0 // loop_header
    %s8 = sphi 0, %s12
    %p9 = scmp.ge.s32.totalorder %s8, 4
    %s18 = sphi 0, %s20
    %s21 = sphi 0, %s18
    %s22 = sphi 0, %s21
    %s38 = sphi 0, %s22
    %s42 = sphi 0, %s42
    %s44 = sphi 0, %s42
    %s45 = sphi 0, %s44
    %s59 = sphi 0, %s45
    %s65 = sphi 0, %s67
    %s68 = sphi 0, %s65
    %s69 = sphi 0, %s68
    %s85 = sphi 0, %s69
  $region4: #{tpu_custom_call.1} parent=0 // loop_header_branch
    %11 = sbr.rel (%p9) target = $region8
  $region5: #{tpu_custom_call.1} parent=0 // loop_body
    %s13 = ssub.s32 %s8, 1
    %s14 = ssub.s32 %s8, 2
    %s15 = sadd.s32 %s8, 1
    %s16 = ssub.s32 %s8, %s15
    %p17 = scmp.eq.s32.totalorder %s16, 0
    %s19 = sadd.s32 %s18, 1
    %s20 = scalar_select %p17, %s18, %s19
    %p23 = pneg %p17
    %p24 = scmp.eq.s32.totalorder %s8, 1
    %p25 = por %p23, %p24
    %p26 = scmp.ne.s32.totalorder %s18, %s21
    %p27 = scmp.eq.s32.totalorder %s8, 0
    %p28 = por %p26, %p27
    %p29 = scmp.ne.s32.totalorder %s18, %s21
    %p30 = scmp.eq.s32.totalorder %s13, 1
    %p31 = por %p29, %p30
    %p32 = scmp.ne.s32.totalorder %s21, %s22
    %p33 = scmp.eq.s32.totalorder %s13, 0
    %p34 = por %p32, %p33
    %p35 = scmp.ne.s32.totalorder %s21, %s22
    %p36 = scmp.eq.s32.totalorder %s14, 1
    %p37 = por %p35, %p36
    %p39 = scmp.ne.s32.totalorder %s22, %s38
    %p40 = scmp.eq.s32.totalorder %s14, 0
    %p41 = por %p39, %p40
    %s43 = sadd.s32 %s42, 1
    %p46 = scmp.eq.s32.totalorder %s8, 1
    %p47 = scmp.ne.s32.totalorder %s42, %s44
    %p48 = scmp.eq.s32.totalorder %s8, 0
    %p49 = por %p47, %p48
    %p50 = scmp.ne.s32.totalorder %s42, %s44
    %p51 = scmp.eq.s32.totalorder %s13, 1
    %p52 = por %p50, %p51
    %p53 = scmp.ne.s32.totalorder %s44, %s45
    %p54 = scmp.eq.s32.totalorder %s13, 0
    %p55 = por %p53, %p54
    %p56 = scmp.ne.s32.totalorder %s44, %s45
    %p57 = scmp.eq.s32.totalorder %s14, 1
    %p58 = por %p56, %p57
    %p60 = scmp.ne.s32.totalorder %s45, %s59
    %p61 = scmp.eq.s32.totalorder %s14, 0
    %p62 = por %p60, %p61
    %s63 = ssub.s32 %s8, %s15
    %p64 = scmp.eq.s32.totalorder %s63, 0
    %s66 = sadd.s32 %s65, 1
    %s67 = scalar_select %p64, %s65, %s66
    %p70 = pneg %p64
    %p71 = scmp.eq.s32.totalorder %s8, 1
    %p72 = por %p70, %p71
    %p73 = scmp.ne.s32.totalorder %s65, %s68
    %p74 = scmp.eq.s32.totalorder %s8, 0
    %p75 = por %p73, %p74
    %p76 = scmp.ne.s32.totalorder %s65, %s68
    %p77 = scmp.eq.s32.totalorder %s13, 1
    %p78 = por %p76, %p77
    %p79 = scmp.ne.s32.totalorder %s68, %s69
    %p80 = scmp.eq.s32.totalorder %s13, 0
    %p81 = por %p79, %p80
    %p82 = scmp.ne.s32.totalorder %s68, %s69
    %p83 = scmp.eq.s32.totalorder %s14, 1
    %p84 = por %p82, %p83
    %p86 = scmp.ne.s32.totalorder %s69, %s85
    %p87 = scmp.eq.s32.totalorder %s14, 0
    %p88 = por %p86, %p87
    %p89 = scmp.le.s32.totalorder 1, %s8
    %p90 = scmp.lt.s32.totalorder %s8, 3
    %p91 = pnand %p89, %p90
    %p92 = pneg %p91
    // Predicated region
    $region9: #{tpu_custom_call.1} parent=5 // pred_check
      _
    $region10: #{tpu_custom_call.1} parent=5 // pred_check_branch
      %94 = sbr.rel (%p91) target = $region12
    $region11: #{tpu_custom_call.1} parent=5 // pred_region
      %s95 = ssub.s32 %s8, 1
      // Predicated region
      $region13: #{tpu_custom_call.1} parent=11 // pred_check
        %p96 = pneg %p55
      $region14: #{tpu_custom_call.1} parent=11 // pred_check_branch
        %98 = sbr.rel (%p96) target = $region16
      $region15: #{tpu_custom_call.1} parent=11 // pred_region
        _
      $region16: #{tpu_custom_call.1} parent=11 // pred_fallthru
        _
    $region12: #{tpu_custom_call.1} parent=5 // pred_fallthru
      _
    %p99 = scmp.lt.s32.totalorder %s8, 2
    // Predicated region
    $region17: #{tpu_custom_call.1} parent=5 // pred_check
      %p100 = pneg %p99
    $region18: #{tpu_custom_call.1} parent=5 // pred_check_branch
      %102 = sbr.rel (%p100) target = $region20
    $region19: #{tpu_custom_call.1} parent=5 // pred_region
      // Predicated region
      $region21: #{tpu_custom_call.1} parent=19 // pred_check
        %p103 = pneg %p28
      $region22: #{tpu_custom_call.1} parent=19 // pred_check_branch
        %105 = sbr.rel (%p103) target = $region24
      $region23: #{tpu_custom_call.1} parent=19 // pred_region
        %s106 = smul.u32 16, %s8
        %p107 = scmp.lt.s32.totalorder %s106, 31
        %s108 = scalar_select %p107, %s106, 31
        %s109 = smul.addr %s108, 8
        %s110 = scalar_lea.vmem %s0, %s109
        %s111 = smul.u32 16, %s8
      $region24: #{tpu_custom_call.1} parent=19 // pred_fallthru
        _
    $region20: #{tpu_custom_call.1} parent=5 // pred_fallthru
      _
    %p112 = scmp.le.s32.totalorder 1, %s8
    %p113 = scmp.lt.s32.totalorder %s8, 3
    %p114 = pnand %p112, %p113
    %p115 = pneg %p114
    // Predicated region
    $region25: #{tpu_custom_call.1} parent=5 // pred_check
      _
    $region26: #{tpu_custom_call.1} parent=5 // pred_check_branch
      %117 = sbr.rel (%p114) target = $region28
    $region27: #{tpu_custom_call.1} parent=5 // pred_region
      %s118 = ssub.s32 %s8, 1
      %s119 = smul.u32 16, %s13
      %p120 = scmp.lt.s32.totalorder %s119, 31
      %s121 = scalar_select %p120, %s119, 31
      %s122 = smul.addr %s121, 8
      %s123 = scalar_lea.vmem %s0, %s122
      %p124 = pneg %p34
      %p125 = pneg %p31
      %p126 = pneg %p55
      %p127 = pneg %p52
      %p128 = pneg %p81
      %p129 = pneg %p78
      %s130 = smul.u32 16, %s13
      %p131 = scmp.lt.s32.totalorder %s130, 31
      %s132 = scalar_select %p131, %s130, 31
      %s133 = smul.addr %s132, 8
      %s134 = scalar_lea.vmem %s2, %s133
      %s135 = smul.u32 16, %s13
      %p136 = scmp.lt.s32.totalorder %s135, 31
      %s137 = scalar_select %p136, %s135, 31
      %s138 = smul.addr %s137, 8
      %s139 = scalar_lea.vmem %s0, %s138
      %s140 = smul.u32 16, %s13
      %s141 = smul.u32 16, %s13
      %p142 = scmp.lt.s32.totalorder %s141, 31
      %s143 = scalar_select %p142, %s141, 31
      %s144 = smul.addr %s143, 8
      %s145 = scalar_lea.vmem %s2, %s144
      %s146 = smul.u32 16, %s13
      %v147 = vld [vmem:[%s139] sm:$0xff]
      %v148 = vld [vmem:[%s139 + $0x8] sm:$0xff]
      %v149 = vld [vmem:[%s139 + $0x10] sm:$0xff]
      %v150 = vld [vmem:[%s139 + $0x18] sm:$0xff]
      %v151 = vld [vmem:[%s139 + $0x20] sm:$0xff]
      %v152 = vld [vmem:[%s139 + $0x28] sm:$0xff]
      %v153 = vld [vmem:[%s139 + $0x30] sm:$0xff]
      %v154 = vld [vmem:[%s139 + $0x38] sm:$0xff]
      %v155 = vld [vmem:[%s139 + $0x40] sm:$0xff]
      %v156 = vld [vmem:[%s139 + $0x48] sm:$0xff]
      %v157 = vld [vmem:[%s139 + $0x50] sm:$0xff]
      %v158 = vld [vmem:[%s139 + $0x58] sm:$0xff]
      %v159 = vld [vmem:[%s139 + $0x60] sm:$0xff]
      %v160 = vld [vmem:[%s139 + $0x68] sm:$0xff]
      %v161 = vld [vmem:[%s139 + $0x70] sm:$0xff]
      %v162 = vld [vmem:[%s139 + $0x78] sm:$0xff]
      %v163 = vld [vmem:[%s1] sm:$0xff]
      %v164 = vld [vmem:[%s1 + $0x8] sm:$0xff]
      %vm165 = vcmask 130048
      %v167 = vsel %vm165, %v147, 0
      %v170 = vsel %vm165, %v148, 0
      %v173 = vsel %vm165, %v149, 0
      %v176 = vsel %vm165, %v150, 0
      %v179 = vsel %vm165, %v151, 0
      %v182 = vsel %vm165, %v152, 0
      %v185 = vsel %vm165, %v153, 0
      %v188 = vsel %vm165, %v154, 0
      %v191 = vsel %vm165, %v155, 0
      %v194 = vsel %vm165, %v156, 0
      %v197 = vsel %vm165, %v157, 0
      %v200 = vsel %vm165, %v158, 0
      %v203 = vsel %vm165, %v159, 0
      %v206 = vsel %vm165, %v160, 0
      %v209 = vsel %vm165, %v161, 0
      %v212 = vsel %vm165, %v162, 0
      %214 = vmatprep.subr.mxu0 0.0
      %215 = vmatpush1.msra.mxu0 0.0
      %216 = vmatprep.subr.mxu0 0.0
      %217 = vmatpush1.msra.mxu0 0.0
      %218 = vmatprep.subr.mxu0 0.0
      %219 = vmatpush1.msra.mxu0 0.0
      %220 = vmatprep.subr.mxu0 0.0
      %221 = vmatpush1.msra.mxu0 0.0
      %222 = vmatprep.subr.mxu0 0.0
      %223 = vmatpush1.msra.mxu0 0.0
      %224 = vmatprep.subr.mxu0 0.0
      %225 = vmatpush1.msra.mxu0 0.0
      %226 = vmatprep.subr.mxu0 0.0
      %227 = vmatpush1.msra.mxu0 0.0
      %228 = vmatprep.subr.mxu0 0.0
      %229 = vmatpush1.msra.mxu0 0.0
      %230 = vmatprep.subr.mxu0 0.0
      %231 = vmatpush1.msra.mxu0 0.0
      %232 = vmatprep.subr.mxu0 0.0
      %233 = vmatpush1.msra.mxu0 0.0
      %234 = vmatprep.subr.mxu0 0.0
      %235 = vmatpush1.msra.mxu0 0.0
      %236 = vmatprep.subr.mxu0 0.0
      %237 = vmatpush1.msra.mxu0 0.0
      %238 = vmatprep.subr.mxu0 0.0
      %239 = vmatpush1.msra.mxu0 0.0
      %240 = vmatprep.subr.mxu0 0.0
      %241 = vmatpush1.msra.mxu0 0.0
      %242 = vmatprep.subr.mxu0 0.0
      %243 = vmatpush1.msra.mxu0 %v164
      %244 = vmatprep.subr.mxu0 0.0
      %245 = vmatpush1.msra.mxu0 %v163
      %246 = vmatprep.subr.mxu0 0.0
      %247 = vmatpush2.msra.mxu0 0.0
      %248 = vmatprep.subr.mxu0 0.0
      %249 = vmatpush2.msra.mxu0 0.0
      %250 = vmatprep.subr.mxu0 0.0
      %251 = vmatpush2.msra.mxu0 0.0
      %252 = vmatprep.subr.mxu0 0.0
      %253 = vmatpush2.msra.mxu0 0.0
      %254 = vmatprep.subr.mxu0 0.0
      %255 = vmatpush2.msra.mxu0 0.0
      %256 = vmatprep.subr.mxu0 0.0
      %257 = vmatpush2.msra.mxu0 0.0
      %258 = vmatprep.subr.mxu0 0.0
      %259 = vmatpush2.msra.mxu0 0.0
      %260 = vmatprep.subr.mxu0 0.0
      %261 = vmatpush2.msra.mxu0 0.0
      %262 = vmatprep.subr.mxu0 0.0
      %263 = vmatpush2.msra.mxu0 0.0
      %264 = vmatprep.subr.mxu0 0.0
      %265 = vmatpush2.msra.mxu0 0.0
      %266 = vmatprep.subr.mxu0 0.0
      %267 = vmatpush2.msra.mxu0 0.0
      %268 = vmatprep.subr.mxu0 0.0
      %269 = vmatpush2.msra.mxu0 0.0
      %270 = vmatprep.subr.mxu0 0.0
      %271 = vmatpush2.msra.mxu0 0.0
      %272 = vmatprep.subr.mxu0 0.0
      %273 = vmatpush2.msra.mxu0 0.0
      %274 = vmatprep.subr.mxu0 0.0
      %275 = vmatpush2.msra.mxu0 0.0
      %276 = vmatprep.subr.mxu0 0.0
      %277 = vmatpush2.msra.mxu0 0.0
      %278 = vmatprep.mubr.f32.mxu0 0.0
      %279 = vmatmul.mubr.f32.gmra.mxu0 %v167
      %v280 = vpop.f32.mrf.mxu0
      %v281 = vadd.f32 0.0, %v280
      %v282 = vpop.f32.mrf.mxu0
      %283 = vmatprep.mubr.f32.mxu0 0.0
      %284 = vmatmul.mubr.f32.gmra.mxu0 %v170
      %v285 = vpop.f32.mrf.mxu0
      %v286 = vadd.f32 0.0, %v285
      %v287 = vpop.f32.mrf.mxu0
      %288 = vmatprep.mubr.f32.mxu0 0.0
      %289 = vmatmul.mubr.f32.gmra.mxu0 %v173
      %v290 = vpop.f32.mrf.mxu0
      %v291 = vadd.f32 0.0, %v290
      %v292 = vpop.f32.mrf.mxu0
      %293 = vmatprep.mubr.f32.mxu0 0.0
      %294 = vmatmul.mubr.f32.gmra.mxu0 %v176
      %v295 = vpop.f32.mrf.mxu0
      %v296 = vadd.f32 0.0, %v295
      %v297 = vpop.f32.mrf.mxu0
      %298 = vmatprep.mubr.f32.mxu0 0.0
      %299 = vmatmul.mubr.f32.gmra.mxu0 %v179
      %v300 = vpop.f32.mrf.mxu0
      %v301 = vadd.f32 0.0, %v300
      %v302 = vpop.f32.mrf.mxu0
      %303 = vmatprep.mubr.f32.mxu0 0.0
      %304 = vmatmul.mubr.f32.gmra.mxu0 %v182
      %v305 = vpop.f32.mrf.mxu0
      %v306 = vadd.f32 0.0, %v305
      %v307 = vpop.f32.mrf.mxu0
      %308 = vmatprep.mubr.f32.mxu0 0.0
      %309 = vmatmul.mubr.f32.gmra.mxu0 %v185
      %v310 = vpop.f32.mrf.mxu0
      %v311 = vadd.f32 0.0, %v310
      %v312 = vpop.f32.mrf.mxu0
      %313 = vmatprep.mubr.f32.mxu0 0.0
      %314 = vmatmul.mubr.f32.gmra.mxu0 %v188
      %v315 = vpop.f32.mrf.mxu0
      %v316 = vadd.f32 0.0, %v315
      %v317 = vpop.f32.mrf.mxu0
      %318 = vmatprep.mubr.f32.mxu0 0.0
      %319 = vmatmul.mubr.f32.gmra.mxu0 %v191
      %v320 = vpop.f32.mrf.mxu0
      %v321 = vadd.f32 0.0, %v320
      %v322 = vpop.f32.mrf.mxu0
      %323 = vmatprep.mubr.f32.mxu0 0.0
      %324 = vmatmul.mubr.f32.gmra.mxu0 %v194
      %v325 = vpop.f32.mrf.mxu0
      %v326 = vadd.f32 0.0, %v325
      %v327 = vpop.f32.mrf.mxu0
      %328 = vmatprep.mubr.f32.mxu0 0.0
      %329 = vmatmul.mubr.f32.gmra.mxu0 %v197
      %v330 = vpop.f32.mrf.mxu0
      %v331 = vadd.f32 0.0, %v330
      %v332 = vpop.f32.mrf.mxu0
      %333 = vmatprep.mubr.f32.mxu0 0.0
      %334 = vmatmul.mubr.f32.gmra.mxu0 %v200
      %v335 = vpop.f32.mrf.mxu0
      %v336 = vadd.f32 0.0, %v335
      %v337 = vpop.f32.mrf.mxu0
      %338 = vmatprep.mubr.f32.mxu0 0.0
      %339 = vmatmul.mubr.f32.gmra.mxu0 %v203
      %v340 = vpop.f32.mrf.mxu0
      %v341 = vadd.f32 0.0, %v340
      %v342 = vpop.f32.mrf.mxu0
      %343 = vmatprep.mubr.f32.mxu0 0.0
      %344 = vmatmul.mubr.f32.gmra.mxu0 %v206
      %v345 = vpop.f32.mrf.mxu0
      %v346 = vadd.f32 0.0, %v345
      %v347 = vpop.f32.mrf.mxu0
      %348 = vmatprep.mubr.f32.mxu0 0.0
      %349 = vmatmul.mubr.f32.gmra.mxu0 %v209
      %v350 = vpop.f32.mrf.mxu0
      %v351 = vadd.f32 0.0, %v350
      %v352 = vpop.f32.mrf.mxu0
      %353 = vmatprep.mubr.f32.mxu0 0.0
      %354 = vmatmul.mubr.f32.gmra.mxu0 %v212
      %v355 = vpop.f32.mrf.mxu0
      %v356 = vadd.f32 0.0, %v355
      %v357 = vpop.f32.mrf.mxu0
      %358 = vdwg.mxu0
      %vm359 = vcmask 261120
      %360 = vst.msk [vmem:[%s145] sm:$0xff] %vm359, %v281
      %361 = vst.msk [vmem:[%s145 + $0x8] sm:$0xff] %vm359, %v286
      %362 = vst.msk [vmem:[%s145 + $0x10] sm:$0xff] %vm359, %v291
      %363 = vst.msk [vmem:[%s145 + $0x18] sm:$0xff] %vm359, %v296
      %364 = vst.msk [vmem:[%s145 + $0x20] sm:$0xff] %vm359, %v301
      %365 = vst.msk [vmem:[%s145 + $0x28] sm:$0xff] %vm359, %v306
      %366 = vst.msk [vmem:[%s145 + $0x30] sm:$0xff] %vm359, %v311
      %367 = vst.msk [vmem:[%s145 + $0x38] sm:$0xff] %vm359, %v316
      %368 = vst.msk [vmem:[%s145 + $0x40] sm:$0xff] %vm359, %v321
      %369 = vst.msk [vmem:[%s145 + $0x48] sm:$0xff] %vm359, %v326
      %370 = vst.msk [vmem:[%s145 + $0x50] sm:$0xff] %vm359, %v331
      %371 = vst.msk [vmem:[%s145 + $0x58] sm:$0xff] %vm359, %v336
      %372 = vst.msk [vmem:[%s145 + $0x60] sm:$0xff] %vm359, %v341
      %373 = vst.msk [vmem:[%s145 + $0x68] sm:$0xff] %vm359, %v346
      %374 = vst.msk [vmem:[%s145 + $0x70] sm:$0xff] %vm359, %v351
      %375 = vst.msk [vmem:[%s145 + $0x78] sm:$0xff] %vm359, %v356
      %s376 = smul.u32 16, %s13
      %p377 = scmp.lt.s32.totalorder %s376, 31
      %s378 = scalar_select %p377, %s376, 31
      %s379 = smul.addr %s378, 8
      %s380 = scalar_lea.vmem %s2, %s379
      // Predicated region
      $region29: #{tpu_custom_call.1} parent=27 // pred_check
        %p381 = pneg %p78
      $region30: #{tpu_custom_call.1} parent=27 // pred_check_branch
        %383 = sbr.rel (%p381) target = $region32
      $region31: #{tpu_custom_call.1} parent=27 // pred_region
        %s384 = smul.u32 16, %s13
      $region32: #{tpu_custom_call.1} parent=27 // pred_fallthru
        _
    $region28: #{tpu_custom_call.1} parent=5 // pred_fallthru
      _
    %p385 = scmp.le.s32.totalorder 2, %s8
    // Predicated region
    $region33: #{tpu_custom_call.1} parent=5 // pred_check
      %p386 = pneg %p385
    $region34: #{tpu_custom_call.1} parent=5 // pred_check_branch
      %388 = sbr.rel (%p386) target = $region36
    $region35: #{tpu_custom_call.1} parent=5 // pred_region
      %s389 = ssub.s32 %s8, 2
      // Predicated region
      $region37: #{tpu_custom_call.1} parent=35 // pred_check
        %p390 = pneg %p84
      $region38: #{tpu_custom_call.1} parent=35 // pred_check_branch
        %392 = sbr.rel (%p390) target = $region40
      $region39: #{tpu_custom_call.1} parent=35 // pred_region
        %s393 = smul.u32 16, %s14
        %p394 = scmp.lt.s32.totalorder %s393, 31
        %s395 = scalar_select %p394, %s393, 31
        %s396 = smul.addr %s395, 8
        %s397 = scalar_lea.vmem %s2, %s396
      $region40: #{tpu_custom_call.1} parent=35 // pred_fallthru
        _
    $region36: #{tpu_custom_call.1} parent=5 // pred_fallthru
      _
  $region6: #{tpu_custom_call.1} parent=0 // loop_footer
    %s12 = sadd.s32 1, %s8
  $region7: #{tpu_custom_call.1} parent=0 // loop_footer_branch
    %7 = sbr.rel target = $region3
  $region8: #{tpu_custom_call.1} parent=0 // loop_exit
    _

</llo_original>
